<compile_context>
chip_gen: v7x
topology: tpu7x:2x2x1
jax: 0.10.0
libtpu: 0.0.40
codegen_flags: <defaults>
</compile_context>

<pallas_src>
import functools
import numpy as np

import jax
import jax.numpy as jnp
from jax.experimental import pallas as pl
from jax.experimental.pallas import tpu as pltpu


# ----------------------------------------------------------------------------
# Helpers: tile selection + per-kernel VMEM budget.
# ----------------------------------------------------------------------------
def _pick_tile(dim, pref, quantum):
    """Largest tile <= pref that divides dim and is a multiple of quantum.

    Falls back to the full extent (always BlockSpec-legal) only when no such
    divisor exists (e.g. a prime-ish dim)."""
    if dim <= pref:
        return dim
    t = (pref // quantum) * quantum
    while t >= quantum:
        if dim % t == 0:
            return t
        t -= quantum
    # TODO(synk): for awkward dims (e.g. M = B*197) a padded cdiv grid would
    # be better than a single full-extent tile; not needed for these shapes.
    return dim


def _vmem_limit(tile_bytes):
    """2x headroom over the double-buffered tile footprint, floor 8 MiB,
    capped at 60 MiB so it never exceeds v7x's 64 MiB physical VMEM."""
    return int(min(max(2 * tile_bytes + (1 << 20), 8 << 20), 60 << 20))


# ----------------------------------------------------------------------------
# Kernel 1: tiled linear layer (stand-in patch embedding), bf16 MXU + f32 acc,
# bf16 writeback.
# ----------------------------------------------------------------------------
def _linear_kernel(x_ref, w_ref, b_ref, o_ref, acc_ref):
    @pl.when(pl.program_id(2) == 0)
    def _():
        acc_ref[...] = jnp.zeros_like(acc_ref)

    acc_ref[...] += jnp.dot(
        x_ref[...], w_ref[...], preferred_element_type=jnp.float32
    )

    @pl.when(pl.program_id(2) == pl.num_programs(2) - 1)
    def _():
        o_ref[...] = (acc_ref[...] + b_ref[...].astype(jnp.float32)).astype(o_ref.dtype)


def pallas_linear(x, w, b, *, tm=512, tn=512, tk=512):
    """x: (M, K) bf16, w: (K, N) bf16, b: (1, N) f32 -> (M, N) bf16."""
    M, K = x.shape
    _, N = w.shape
    tm = _pick_tile(M, tm, 8)
    tn = _pick_tile(N, tn, 128)
    tk = _pick_tile(K, tk, 128)
    tile_bytes = 2 * (tm * tk * 2 + tk * tn * 2 + tn * 4 + tm * tn * 2) + tm * tn * 4
    return pl.pallas_call(
        _linear_kernel,
        out_shape=jax.ShapeDtypeStruct((M, N), jnp.bfloat16),
        grid_spec=pltpu.PrefetchScalarGridSpec(
            num_scalar_prefetch=0,
            grid=(M // tm, N // tn, K // tk),
            in_specs=[
                pl.BlockSpec((tm, tk), lambda i, j, k: (i, k)),
                pl.BlockSpec((tk, tn), lambda i, j, k: (k, j)),
                pl.BlockSpec((1, tn), lambda i, j, k: (0, j)),
            ],
            out_specs=pl.BlockSpec((tm, tn), lambda i, j, k: (i, j)),
            scratch_shapes=[pltpu.VMEM((tm, tn), jnp.float32)],
        ),
        compiler_params=pltpu.CompilerParams(
            dimension_semantics=("parallel", "parallel", "arbitrary"),
            vmem_limit_bytes=_vmem_limit(tile_bytes),
        ),
    )(x, w, b)


# ----------------------------------------------------------------------------
# Kernel 2: F.normalize(image_feat, dim=-1) then text @ image_patches^T.
# Output is (C, B*P): the long patch axis is the lane dim (lane-dense stores,
# full MXU N occupancy); text is pre-normalized once on the host.
# ----------------------------------------------------------------------------
def _norm_match_kernel(txt_ref, img_ref, o_ref):
    # txt_ref: (C, D) bf16, pre-L2-normalized; img_ref: (tp, D) bf16;
    # o_ref:  (C, tp) f32
    x = img_ref[...].astype(jnp.float32)
    # F.normalize(p=2, dim=-1, eps=1e-12): x / max(||x||, eps)
    # == x * rsqrt(max(||x||^2, eps^2)); rsqrt routes to the EUP slot.
    inv_norm = jax.lax.rsqrt(
        jnp.maximum(jnp.sum(x * x, axis=-1, keepdims=True), 1e-24)
    )
    x_n = (x * inv_norm).astype(jnp.bfloat16)
    # (C, D) . (tp, D)^T -> (C, tp) without materializing a transpose.
    o_ref[...] = jax.lax.dot_general(
        txt_ref[...],
        x_n,
        dimension_numbers=(((1,), (1,)), ((), ())),
        preferred_element_type=jnp.float32,
    )


def _match_tile(bp, pref=1024):
    """Lane-dense tile along the B*P axis: multiple of 128 that divides BP,
    otherwise the full extent (legal as the full array dim)."""
    if bp % 128 == 0:
        t = (min(pref, bp) // 128) * 128
        while t >= 128:
            if bp % t == 0:
                return t
            t -= 128
    return bp


# ----------------------------------------------------------------------------
# Kernel 3: bilinear upsample (align_corners=False) as two 2-D matmuls
# (lane dim = W), fused with per-(b, c) min-max normalization.
# One (H, W) map live per grid step; grid = (B, C), both parallel.
# ----------------------------------------------------------------------------
def _upsample_minmax_kernel(x_ref, wrow_ref, wcolT_ref, o_ref, *, normalize):
    # x_ref: (1, 1, wg, hg) f32; wrow_ref: (H, wg) f32; wcolT_ref: (hg, W) f32
    x = x_ref[0, 0]                                                   # (wg, hg)
    a = jnp.dot(x, wcolT_ref[...], preferred_element_type=jnp.float32)   # (wg, W)
    up = jnp.dot(wrow_ref[...], a, preferred_element_type=jnp.float32)   # (H, W)
    if normalize:
        mn = jnp.min(up, axis=(0, 1), keepdims=True)
        mx = jnp.max(up, axis=(0, 1), keepdims=True)
        up = (up - mn) / (mx - mn)        # exact division, matches PyTorch
    o_ref[0, 0] = up.astype(o_ref.dtype)


# ----------------------------------------------------------------------------
# Host-side glue.
# ----------------------------------------------------------------------------
def _bilinear_matrix(out_size, in_size):
    """Row-stochastic matrix reproducing F.interpolate(mode='bilinear',
    align_corners=False) along one axis."""
    scale = in_size / out_size
    dst = np.arange(out_size, dtype=np.float64)
    src = (dst + 0.5) * scale - 0.5
    src = np.clip(src, 0.0, None)          # PyTorch clamps negative coords to 0
    i0 = np.floor(src).astype(np.int64)
    i0 = np.minimum(i0, in_size - 1)
    i1 = np.minimum(i0 + 1, in_size - 1)
    lam = src - i0
    m = np.zeros((out_size, in_size), dtype=np.float32)
    m[np.arange(out_size), i0] += (1.0 - lam).astype(np.float32)
    m[np.arange(out_size), i1] += lam.astype(np.float32)
    return jnp.asarray(m)


def gem_forward(image, text_embeddings, patch_embed_w, patch_embed_b,
                *, patch_size, normalize=True):
    """Reproduces GEMWrapper.forward (with a synthetic visual/text encoder).

    image:            [B, 3, H, W]   (NCHW)
    text_embeddings:  [C, D]         (un-normalized; normalized once on host)
    returns:          [B, C, H, W]   (NCHW heatmap)
    """
    B, Cin, H, W = image.shape
    p = patch_size
    wg, hg = H // p, W // p          # patch grid along dims -2 / -1
    P = wg * hg
    BP = B * P
    D = patch_embed_w.shape[1]
    C = text_embeddings.shape[0]

    # ---- stand-in for self.model.visual(image): patchify + linear --------
    # TODO(synk): the real CLIP VisionTransformer (with SelfSelfAttention /
    # GEMResidualBlock) is an external sub-model and is not translated.
    # The CLS token the real encoder would prepend is never consumed by
    # forward() (it slices [:, 1:]), so it is not materialized at all.
    img_bf16 = image.astype(jnp.bfloat16)              # halve transpose traffic
    patches = img_bf16.reshape(B, Cin, wg, p, hg, p)
    patches = patches.transpose(0, 2, 4, 1, 3, 5).reshape(BP, Cin * p * p)
    tokens = pallas_linear(
        patches,
        patch_embed_w.astype(jnp.bfloat16),
        patch_embed_b.astype(jnp.float32),
    )                                                   # (B*P, D) bf16

    # ---- normalize text ONCE on host (F.normalize semantics, eps=1e-12) ----
    t = text_embeddings.astype(jnp.float32)
    t_n = (t / jnp.maximum(
        jnp.sqrt(jnp.sum(t * t, axis=-1, keepdims=True)), 1e-12
    )).astype(jnp.bfloat16)

    # ---- normalize image tokens + text @ image_patches^T (Pallas) ----------
    tp = _match_tile(BP)
    k2_bytes = 2 * (C * D * 2 + tp * D * 2 + C * tp * 4)
    logits_cbp = pl.pallas_call(
        _norm_match_kernel,
        out_shape=jax.ShapeDtypeStruct((C, BP), jnp.float32),
        grid_spec=pltpu.PrefetchScalarGridSpec(
            num_scalar_prefetch=0,
            grid=(BP // tp,),
            in_specs=[
                pl.BlockSpec((C, D), lambda i: (0, 0)),
                pl.BlockSpec((tp, D), lambda i: (i, 0)),
            ],
            out_specs=pl.BlockSpec((C, tp), lambda i: (0, i)),
        ),
        compiler_params=pltpu.CompilerParams(
            dimension_semantics=("parallel",),
            vmem_limit_bytes=_vmem_limit(k2_bytes),
        ),
    )(t_n, tokens)

    # 'b (w h) c -> b c w h' stays a PURE reshape; the transposed (C, B, ...)
    # layout is absorbed by kernel 3's index_map (no host transpose).
    heat_cbwh = logits_cbp.reshape(C, B, wg, hg)

    # ---- bilinear upsample to (H, W) + min-max normalize (Pallas) ----------
    wrow = _bilinear_matrix(H, wg)       # output rows    (dim -2)
    wcolT = _bilinear_matrix(W, hg).T    # (hg, W): pre-transposed on host
    kern = functools.partial(_upsample_minmax_kernel, normalize=normalize)
    k3_bytes = 2 * (wg * hg * 4 + H * wg * 4 + hg * W * 4 + H * W * 4)
    out = pl.pallas_call(
        kern,
        out_shape=jax.ShapeDtypeStruct((B, C, H, W), jnp.float32),
        grid_spec=pltpu.PrefetchScalarGridSpec(
            num_scalar_prefetch=0,
            grid=(B, C),
            in_specs=[
                pl.BlockSpec((1, 1, wg, hg), lambda b, c: (c, b, 0, 0)),
                pl.BlockSpec((H, wg), lambda b, c: (0, 0)),
                pl.BlockSpec((hg, W), lambda b, c: (0, 0)),
            ],
            out_specs=pl.BlockSpec((1, 1, H, W), lambda b, c: (b, c, 0, 0)),
        ),
        compiler_params=pltpu.CompilerParams(
            dimension_semantics=("parallel", "parallel"),
            vmem_limit_bytes=_vmem_limit(k3_bytes),
        ),
    )(heat_cbwh, wrow, wcolT)
    return out


if __name__ == "__main__":
    # Small, deterministic setup: image [2, 3, 16, 16], patch_size 4 -> 4x4
    # grid of 16 patches, feature dim D=32, 3 text prompts.
    key = jax.random.PRNGKey(0)
    k_img, k_w, k_b, k_txt = jax.random.split(key, 4)

    B, Cin, H, W = 2, 3, 16, 16
    patch_size = 4
    D = 32
    num_prompts = 3

    image = jax.random.normal(k_img, (B, Cin, H, W), dtype=jnp.float32)
    patch_embed_w = 0.1 * jax.random.normal(
        k_w, (Cin * patch_size * patch_size, D), dtype=jnp.float32
    )
    patch_embed_b = 0.01 * jax.random.normal(k_b, (1, D), dtype=jnp.float32)
    # TODO(synk): tokenizer + CLIP text transformer not translated; synthetic
    # deterministic text embeddings stand in for encode_text()'s output.
    text_embeddings = jax.random.normal(k_txt, (num_prompts, D), dtype=jnp.float32)

    out = gem_forward(
        image, text_embeddings, patch_embed_w, patch_embed_b,
        patch_size=patch_size, normalize=True,
    )
    out = jax.block_until_ready(out)

    assert out.shape == (B, num_prompts, H, W), out.shape
    assert bool(jnp.all(jnp.isfinite(out)))
    # Exact min-max division: each (b, prompt) map lies in [0, 1].
    assert float(jnp.min(out)) >= -1e-5 and float(jnp.max(out)) <= 1.0 + 1e-5
    print("KERNEL_OK")
</pallas_src>

<mosaic_0001>
module attributes {stable_mosaic.version = 11 : i64} {
  func.func @_linear_kernel(%arg0: i32, %arg1: i32, %arg2: i32, %arg3: memref<32x48xbf16, #tpu.memory_space<vmem>>, %arg4: memref<48x32xbf16, #tpu.memory_space<vmem>>, %arg5: memref<1x32xf32, #tpu.memory_space<vmem>>, %arg6: memref<32x32xbf16, #tpu.memory_space<vmem>>, %arg7: memref<32x32xf32, #tpu.memory_space<vmem>>) attributes {dimension_semantics = [#tpu.dimension_semantics<parallel>, #tpu.dimension_semantics<parallel>, #tpu.dimension_semantics<arbitrary>], iteration_bounds = array<i64: 1, 1, 1>, scalar_prefetch = 0 : i64, scratch_operands = 1 : i64, tpu.core_type = #tpu.core_type<tc>, window_params = [{transform_indices = @transform_0, window_bounds = array<i64: 32, 48>}, {transform_indices = @transform_1, window_bounds = array<i64: 48, 32>}, {transform_indices = @transform_2, window_bounds = array<i64: 1, 32>}, {transform_indices = @transform_3, window_bounds = array<i64: 32, 32>}]} {
    %c0_i32 = arith.constant 0 : i32
    %0 = arith.cmpi eq, %arg2, %c0_i32 : i32
    %1 = arith.extui %0 : i1 to i32
    %c0_i32_0 = arith.constant 0 : i32
    %2 = arith.cmpi ne, %1, %c0_i32_0 : i32
    scf.if %2 {
      %cst_10 = arith.constant 0.000000e+00 : f32
      %12 = vector.broadcast %cst_10 : f32 to vector<32x32xf32>
      %c0_11 = arith.constant 0 : index
      %c0_12 = arith.constant 0 : index
      %13 = vector.load %arg7[%c0_11, %c0_12] : memref<32x32xf32, #tpu.memory_space<vmem>>, vector<32x32xf32>
      tpu.vector_store %arg7[%c0_11, %c0_12], %12 {strides = array<i32>} : memref<32x32xf32, #tpu.memory_space<vmem>>, vector<32x32xf32>,
    } else {
    }
    %c0 = arith.constant 0 : index
    %c0_1 = arith.constant 0 : index
    %3 = vector.load %arg7[%c0, %c0_1] : memref<32x32xf32, #tpu.memory_space<vmem>>, vector<32x32xf32>
    %c0_2 = arith.constant 0 : index
    %c0_3 = arith.constant 0 : index
    %4 = vector.load %arg3[%c0_2, %c0_3] : memref<32x48xbf16, #tpu.memory_space<vmem>>, vector<32x48xbf16>
    %c0_4 = arith.constant 0 : index
    %c0_5 = arith.constant 0 : index
    %5 = vector.load %arg4[%c0_4, %c0_5] : memref<48x32xbf16, #tpu.memory_space<vmem>>, vector<48x32xbf16>
    %cst = arith.constant dense<0.000000e+00> : vector<32x32xf32>
    %6 = tpu.matmul %4, %5, %cst {dimension_numbers = #tpu.dot_dimension_numbers<[1], [0], [0], [1], [0, 0, 1, 1], [], []>} : vector<32x48xbf16>, vector<48x32xbf16>, vector<32x32xf32> -> vector<32x32xf32>
    %7 = arith.addf %3, %6 : vector<32x32xf32>
    %c0_6 = arith.constant 0 : index
    %c0_7 = arith.constant 0 : index
    %8 = vector.load %arg7[%c0_6, %c0_7] : memref<32x32xf32, #tpu.memory_space<vmem>>, vector<32x32xf32>
    tpu.vector_store %arg7[%c0_6, %c0_7], %7 {strides = array<i32>} : memref<32x32xf32, #tpu.memory_space<vmem>>, vector<32x32xf32>,
    %c0_i32_8 = arith.constant 0 : i32
    %9 = arith.cmpi eq, %arg2, %c0_i32_8 : i32
    %10 = arith.extui %9 : i1 to i32
    %c0_i32_9 = arith.constant 0 : i32
    %11 = arith.cmpi ne, %10, %c0_i32_9 : i32
    scf.if %11 {
      %c0_10 = arith.constant 0 : index
      %c0_11 = arith.constant 0 : index
      %12 = vector.load %arg7[%c0_10, %c0_11] : memref<32x32xf32, #tpu.memory_space<vmem>>, vector<32x32xf32>
      %c0_12 = arith.constant 0 : index
      %c0_13 = arith.constant 0 : index
      %13 = vector.load %arg5[%c0_12, %c0_13] : memref<1x32xf32, #tpu.memory_space<vmem>>, vector<1x32xf32>
      %14 = vector.broadcast %13 : vector<1x32xf32> to vector<32x32xf32>
      %15 = arith.addf %12, %14 : vector<32x32xf32>
      %16 = arith.truncf %15 : vector<32x32xf32> to vector<32x32xbf16>
      %c0_14 = arith.constant 0 : index
      %c0_15 = arith.constant 0 : index
      %17 = vector.load %arg6[%c0_14, %c0_15] : memref<32x32xbf16, #tpu.memory_space<vmem>>, vector<32x32xbf16>
      tpu.vector_store %arg6[%c0_14, %c0_15], %16 {strides = array<i32>} : memref<32x32xbf16, #tpu.memory_space<vmem>>, vector<32x32xbf16>,
    } else {
    }
    return
  }
  func.func @transform_0(%arg0: i32, %arg1: i32, %arg2: i32) -> (i32, i32) {
    %c0_i32 = arith.constant 0 : i32
    return %arg0, %arg2 : i32, i32
  }
  func.func @transform_1(%arg0: i32, %arg1: i32, %arg2: i32) -> (i32, i32) {
    %c0_i32 = arith.constant 0 : i32
    return %arg2, %arg1 : i32, i32
  }
  func.func @transform_2(%arg0: i32, %arg1: i32, %arg2: i32) -> (i32, i32) {
    %c0_i32 = arith.constant 0 : i32
    %c0_i32_0 = arith.constant 0 : i32
    return %c0_i32, %arg1 : i32, i32
  }
  func.func @transform_3(%arg0: i32, %arg1: i32, %arg2: i32) -> (i32, i32) {
    %c0_i32 = arith.constant 0 : i32
    return %arg0, %arg1 : i32, i32
  }
}

</mosaic_0001>

<llo_original>
// kernel: tpu_custom_call.1
$region0: #{tpu_custom_call.1}
  #allocation0 [shape = 'u32[]', space=smem, size = 0x4, offset = 0x4, fixed_abs, tag = 'smem constant byte address 0x4 - core index']
  #allocation1 [shape = 'u32[144,128]{1,0:T(1,128)}', space=vmem, size = 0x12000, scoped, tag = 'internal scratch']
  #allocation2 [shape = 'f32[32,32]{1,0:T(8,128)}', space=vmem, size = 0x4000, scoped, tag = 'scratch operand']
  %s0 = inlined_call_operand.vmem [shape: bf16[32,48], index: 0, kind: input, shape index: {}]
  %s1 = inlined_call_operand.vmem [shape: bf16[48,32], index: 1, kind: input, shape index: {}]
  %s2 = inlined_call_operand.vmem [shape: f32[1,32], index: 2, kind: input, shape index: {}]
  %s3 = inlined_call_operand.hbm [shape: bf16[32,32], index: 3, kind: output, shape index: {}]
  %s4 = sld [smem:[#allocation0]]
  $region30: #{tpu_custom_call.1} parent=0
    _
  %s6 = ssub.s32 1, %s4
  %s7 = scalar_select 0, %s6, %s4
  $region1: #{tpu_custom_call.1} parent=0
    #allocation3 [shape = 'u8[8192]{0}', space=vmem, size = 0x2000, scoped, tag = 'output window, operand 0, single buffered']
    #allocation4 [shape = 's32[1]{0}', space=sflag, size = 0x4, scoped, tag = 'scoped memory for tpu_custom_call.1']
    %8 = vsyncpa [#allocation4], 0
    // Predicated region
    $region2: #{tpu_custom_call.1} parent=1 // pred_check
      _
    $region3: #{tpu_custom_call.1} parent=1 // pred_check_branch
      %10 = sbr.rel (0) target = $region5
    $region4: #{tpu_custom_call.1} parent=1 // pred_region
      _
    $region5: #{tpu_custom_call.1} parent=1 // pred_fallthru
      _
    // Predicated region
    $region6: #{tpu_custom_call.1} parent=1 // pred_check
      _
    $region7: #{tpu_custom_call.1} parent=1 // pred_check_branch
      %12 = sbr.rel (0) target = $region9
    $region8: #{tpu_custom_call.1} parent=1 // pred_region
      _
    $region9: #{tpu_custom_call.1} parent=1 // pred_fallthru
      _
    // Predicated region
    $region10: #{tpu_custom_call.1} parent=1 // pred_check
      _
    $region11: #{tpu_custom_call.1} parent=1 // pred_check_branch
      %14 = sbr.rel (0) target = $region13
    $region12: #{tpu_custom_call.1} parent=1 // pred_region
      _
    $region13: #{tpu_custom_call.1} parent=1 // pred_fallthru
      _
    %p16 = scmp.eq.s32.totalorder 0, 0
    // Predicated region
    $region14: #{tpu_custom_call.1} parent=1 // pred_check
      %p17 = pneg %p16
    $region15: #{tpu_custom_call.1} parent=1 // pred_check_branch
      %19 = sbr.rel (%p17) target = $region17
    $region16: #{tpu_custom_call.1} parent=1 // pred_region
      %vm20 = vcmask 261120
      %21 = vst.msk [vmem:[#allocation2] sm:$0xff] %vm20, 0.0
      %22 = vst.msk [vmem:[#allocation2 + $0x8] sm:$0xff] %vm20, 0.0
      %23 = vst.msk [vmem:[#allocation2 + $0x10] sm:$0xff] %vm20, 0.0
      %24 = vst.msk [vmem:[#allocation2 + $0x18] sm:$0xff] %vm20, 0.0
    $region17: #{tpu_custom_call.1} parent=1 // pred_fallthru
      _
    %v25 = vld [vmem:[#allocation2] sm:$0xff]
    %v26 = vld [vmem:[#allocation2 + $0x8] sm:$0xff]
    %v27 = vld [vmem:[#allocation2 + $0x10] sm:$0xff]
    %v28 = vld [vmem:[#allocation2 + $0x18] sm:$0xff]
    %v29 = vld [vmem:[%s0] sm:$0xf]
    %v30 = vld [vmem:[%s0 + $0x4] sm:$0xf]
    %v31 = vld [vmem:[%s0 + $0x8] sm:$0xf]
    %v32 = vld [vmem:[%s0 + $0xc] sm:$0xf]
    %v33 = vld [vmem:[%s1] sm:$0xf]
    %v34 = vld [vmem:[%s1 + $0x4] sm:$0xf]
    %v35 = vld [vmem:[%s1 + $0x8] sm:$0xf]
    %v36 = vld [vmem:[%s1 + $0xc] sm:$0xf]
    %v37 = vld [vmem:[%s1 + $0x10] sm:$0xf]
    %v38 = vld [vmem:[%s1 + $0x14] sm:$0xf]
    %v43 = vunpack.c.l.b16 %v29
    %v44 = vunpack.c.l.b16 %v30
    %v45 = vunpack.c.l.b16 %v31
    %v46 = vunpack.c.l.b16 %v32
    %v47 = vpack.c.b16 %v44, %v43
    %v48 = vpack.c.b16 %v46, %v45
    %v55 = vunpack.c.l.b16 %v33
    %v56 = vunpack.c.l.b16 %v34
    %v57 = vunpack.c.l.b16 %v35
    %v58 = vunpack.c.l.b16 %v36
    %v59 = vunpack.c.l.b16 %v37
    %v60 = vunpack.c.l.b16 %v38
    %v61 = vpack.c.b16 %v56, %v55
    %v62 = vpack.c.b16 %v58, %v57
    %v63 = vpack.c.b16 %v60, %v59
    %vm67 = vcmask 392192
    %v69 = vsel %vm67, %v47, 0
    %v72 = vsel %vm67, %v48, 0
    %74 = vmatprep.subr.bf16.mxu0 0
    %75 = vmatpush1.bf16.msra.mxu0 %v61
    %76 = vmatprep.subr.bf16.mxu0 0
    %77 = vmatpush1.bf16.msra.mxu0 %v62
    %78 = vmatprep.subr.bf16.mxu0 0
    %79 = vmatpush1.bf16.msra.mxu0 %v63
    %80 = vmatprep.subr.bf16.mxu0 0
    %81 = vmatpush1.bf16.msra.mxu0 0
    %82 = vmatprep.subr.bf16.mxu0 0
    %83 = vmatpush1.bf16.msra.mxu0 0
    %84 = vmatprep.subr.bf16.mxu0 0
    %85 = vmatpush1.bf16.msra.mxu0 0
    %86 = vmatprep.subr.bf16.mxu0 0
    %87 = vmatpush1.bf16.msra.mxu0 0
    %88 = vmatprep.subr.bf16.mxu0 0
    %89 = vmatpush1.bf16.msra.mxu0 0
    %90 = vmatprep.subr.bf16.mxu0 0
    %91 = vmatpush1.bf16.msra.mxu0 0
    %92 = vmatprep.subr.bf16.mxu0 0
    %93 = vmatpush1.bf16.msra.mxu0 0
    %94 = vmatprep.subr.bf16.mxu0 0
    %95 = vmatpush1.bf16.msra.mxu0 0
    %96 = vmatprep.subr.bf16.mxu0 0
    %97 = vmatpush1.bf16.msra.mxu0 0
    %98 = vmatprep.subr.bf16.mxu0 0
    %99 = vmatpush1.bf16.msra.mxu0 0
    %100 = vmatprep.subr.bf16.mxu0 0
    %101 = vmatpush1.bf16.msra.mxu0 0
    %102 = vmatprep.subr.bf16.mxu0 0
    %103 = vmatpush1.bf16.msra.mxu0 0
    %104 = vmatprep.subr.bf16.mxu0 0
    %105 = vmatpush1.bf16.msra.mxu0 0
    %106 = vmatprep.mubr.bf16.mxu0 0
    %107 = vmatmul.mubr.bf16.gmra.mrb[0].mxu0 %v69
    %v108 = vpop.f32.mrb[0].mxu0
    %v109 = vadd.f32 0.0, %v108
    %v110 = vpop.f32.mrb[0].mxu0
    %v111 = vpop.f32.mrb[0].mxu0
    %v112 = vadd.f32 0.0, %v111
    %v113 = vpop.f32.mrb[0].mxu0
    %114 = vmatprep.mubr.bf16.mxu0 0
    %115 = vmatmul.mubr.bf16.gmra.mrb[0].mxu0 %v72
    %v116 = vpop.f32.mrb[0].mxu0
    %v117 = vadd.f32 0.0, %v116
    %v118 = vpop.f32.mrb[0].mxu0
    %v119 = vpop.f32.mrb[0].mxu0
    %v120 = vadd.f32 0.0, %v119
    %v121 = vpop.f32.mrb[0].mxu0
    %122 = vdwg.mxu0
    %v123 = vadd.f32 %v25, %v109
    %v124 = vadd.f32 %v26, %v112
    %v125 = vadd.f32 %v27, %v117
    %v126 = vadd.f32 %v28, %v120
    %vm127 = vcmask 261120
    %128 = vst.msk [vmem:[#allocation2] sm:$0xff] %vm127, %v123
    %129 = vst.msk [vmem:[#allocation2 + $0x8] sm:$0xff] %vm127, %v124
    %130 = vst.msk [vmem:[#allocation2 + $0x10] sm:$0xff] %vm127, %v125
    %131 = vst.msk [vmem:[#allocation2 + $0x18] sm:$0xff] %vm127, %v126
    // Predicated region
    $region18: #{tpu_custom_call.1} parent=1 // pred_check
      %p132 = pneg %p16
    $region19: #{tpu_custom_call.1} parent=1 // pred_check_branch
      %134 = sbr.rel (%p132) target = $region21
    $region20: #{tpu_custom_call.1} parent=1 // pred_region
      %v135 = vld [vmem:[#allocation2] sm:$0xff]
      %v136 = vld [vmem:[#allocation2 + $0x8] sm:$0xff]
      %v137 = vld [vmem:[#allocation2 + $0x10] sm:$0xff]
      %v138 = vld [vmem:[#allocation2 + $0x18] sm:$0xff]
      %v139 = vld [vmem:[%s2] sm:$0x1]
      %v141 = vlaneseq
      %v142 = vshrl.u32 %v141, 7
      %v143 = vsub.s32 0, %v142
      %v144 = vrot.slane %v139, %v143
      %v146 = vadd.f32 %v135, %v144
      %v147 = vadd.f32 %v136, %v144
      %v148 = vadd.f32 %v137, %v144
      %v149 = vadd.f32 %v138, %v144
      %v150 = vpack.c.bf16 %v147, %v146
      %v151 = vpack.c.bf16 %v149, %v148
      %v154 = vunpack.c.l.b16 %v150
      %v155 = vunpack.c.h.b16 %v150
      %v156 = vunpack.c.l.b16 %v151
      %v157 = vunpack.c.h.b16 %v151
      %v158 = vpack.c.b16 %v154, %v154
      %v159 = vpack.c.b16 %v155, %v155
      %v160 = vpack.c.b16 %v156, %v156
      %v161 = vpack.c.b16 %v157, %v157
      %vm166 = vcmask 257024
      %167 = vst.msk [vmem:[#allocation3] sm:$0xf] %vm166, %v158
      %168 = vst.msk [vmem:[#allocation3 + $0x4] sm:$0xf] %vm166, %v159
      %169 = vst.msk [vmem:[#allocation3 + $0x8] sm:$0xf] %vm166, %v160
      %170 = vst.msk [vmem:[#allocation3 + $0xc] sm:$0xf] %vm166, %v161
    $region21: #{tpu_custom_call.1} parent=1 // pred_fallthru
      _
    // Predicated region
    $region22: #{tpu_custom_call.1} parent=1 // pred_check
      _
    $region23: #{tpu_custom_call.1} parent=1 // pred_check_branch
      %172 = sbr.rel (0) target = $region25
    $region24: #{tpu_custom_call.1} parent=1 // pred_region
      %s174 = ssub.s32 256, 256
      %175 = vsyncadd [#allocation4], %s174
      %s176 = sshll.u32 [#allocation3], 4
      %s177 = int_to_ptr.vmem [resolvable:$true] %s176
      %182 = dma.vmem_to_hbm [thread:$0]  %s177, 256, %s3, [#allocation4], 64, 64, 4
    $region25: #{tpu_custom_call.1} parent=1 // pred_fallthru
      _
    // Predicated region
    $region26: #{tpu_custom_call.1} parent=1 // pred_check
      _
    $region27: #{tpu_custom_call.1} parent=1 // pred_check_branch
      %184 = sbr.rel (0) target = $region29
    $region28: #{tpu_custom_call.1} parent=1 // pred_region
      %185 = dma.done [#allocation4], 256
    $region29: #{tpu_custom_call.1} parent=1 // pred_fallthru
      _
    %186 = vsyncpa [#allocation4], 1

</llo_original>
